<compile_context>
chip_gen: v6e
topology: v6e:2x2x1
jax: 0.10.0
libtpu: 0.0.40
codegen_flags: <defaults>
</compile_context>

<pallas_src>
import jax
import jax.numpy as jnp
from jax.experimental import pallas as pl
from jax.experimental.pallas import tpu as pltpu


def mlp_kernel(u_ref, i_ref, w1u_ref, w1i_ref, b1_ref, w2_ref, b2_ref, o_ref):
    # Layer 1: Linear(Cu+Ci, H).  torch.cat([u, i], 1) @ W1 is computed as
    # u @ W1[:Cu] + i @ W1[Cu:], avoiding any lane-axis concat in-kernel.
    # Operands are bf16, accumulation is f32 on the MXU.
    h = jnp.dot(u_ref[...], w1u_ref[...], preferred_element_type=jnp.float32)
    h = h + jnp.dot(i_ref[...], w1i_ref[...], preferred_element_type=jnp.float32)
    h = jnp.maximum(h + b1_ref[...], 0.0)          # bias + ReLU in f32 on the VPU
    # Dropout: inference mode -> identity.
    # TODO(synk): training-mode dropout (pltpu.prng_random_bits mask) not emitted.

    # Layer 2: Linear(H, 1).  VPU multiply + cross-lane reduction; the MXU
    # critical path only contains the layer-1 dots.
    y = jnp.sum(h * w2_ref[...], axis=-1, keepdims=True) + b2_ref[0]   # (TB, 1)
    o_ref[...] = y.astype(o_ref.dtype)


def _round_up(x, m):
    return ((x + m - 1) // m) * m


def mlp_forward(user_feature, item_feature, w1, b1, w2, b2, *,
                block_b=512, compute_dtype=jnp.bfloat16):
    """user_feature: (B, Cu), item_feature: (B, Ci).
    w1: (Cu+Ci, H), b1: (1, H), w2: (H, 1), b2: (1, 1)  (weights pre-transposed
    to (fan_in, fan_out))."""
    B, Cu = user_feature.shape
    Ci = item_feature.shape[1]
    Cin, H = w1.shape
    assert Cin == Cu + Ci and w2.shape == (H, 1)

    # Split W1 so the kernel never concatenates along the lane axis; cast the
    # matmul operands to bf16 (exact bf16 x bf16 products, f32 accumulate).
    w1_u = w1[:Cu].astype(compute_dtype)
    w1_i = w1[Cu:].astype(compute_dtype)
    u = user_feature.astype(compute_dtype)
    it = item_feature.astype(compute_dtype)
    b1_r = b1.reshape(1, H).astype(jnp.float32)
    w2_r = w2.reshape(1, H).astype(jnp.float32)     # row vector for VPU mul+reduce
    b2_s = b2.reshape(1).astype(jnp.float32)        # scalar bias -> SMEM

    # Batch tiling: TB rows per grid step, padded to a sublane multiple so any
    # B is legal.  Weights use constant index maps so they stay VMEM-resident;
    # input/output tiles are double-buffered by the Pallas pipeline.
    TB = min(block_b, _round_up(B, 8))
    Bp = _round_up(B, TB)
    if Bp != B:
        pad = Bp - B
        u = jnp.pad(u, ((0, pad), (0, 0)))
        it = jnp.pad(it, ((0, pad), (0, 0)))
    grid = (Bp // TB,)

    flops = 2 * Bp * (Cu + Ci) * H + 3 * Bp * H
    bytes_accessed = ((Bp * (Cu + Ci) + (Cu + Ci) * H) * jnp.dtype(compute_dtype).itemsize
                      + (2 * H + 1 + Bp) * 4)

    out = pl.pallas_call(
        mlp_kernel,
        out_shape=jax.ShapeDtypeStruct((Bp, 1), jnp.float32),
        grid=grid,
        in_specs=[
            pl.BlockSpec((TB, Cu), lambda b: (b, 0)),          # user tile
            pl.BlockSpec((TB, Ci), lambda b: (b, 0)),          # item tile
            pl.BlockSpec((Cu, H), lambda b: (0, 0)),           # W1[:Cu]  (resident)
            pl.BlockSpec((Ci, H), lambda b: (0, 0)),           # W1[Cu:]  (resident)
            pl.BlockSpec((1, H), lambda b: (0, 0)),            # b1       (resident)
            pl.BlockSpec((1, H), lambda b: (0, 0)),            # w2 row   (resident)
            pl.BlockSpec(memory_space=pltpu.MemorySpace.SMEM), # b2 scalar
        ],
        out_specs=pl.BlockSpec((TB, 1), lambda b: (b, 0)),
        compiler_params=pltpu.CompilerParams(
            dimension_semantics=("parallel",),      # megacore split on v7x
            vmem_limit_bytes=32 * 1024 * 1024,
        ),
        cost_estimate=pl.CostEstimate(
            flops=flops, transcendentals=0, bytes_accessed=bytes_accessed),
    )(u, it, w1_u, w1_i, b1_r, w2_r, b2_s)
    return out[:B]


def init_params(key, input_channels, latent_dim=(128, 1)):
    """Deterministic PyTorch-style init: U(-1/sqrt(fan_in), 1/sqrt(fan_in)).
    Returns weights already transposed to (fan_in, fan_out)."""
    dims = (input_channels,) + tuple(latent_dim)
    params = []
    for i in range(len(dims) - 1):
        fan_in, fan_out = dims[i], dims[i + 1]
        key, kw, kb = jax.random.split(key, 3)
        bound = 1.0 / jnp.sqrt(jnp.float32(fan_in))
        w = jax.random.uniform(kw, (fan_in, fan_out), jnp.float32, -bound, bound)
        b = jax.random.uniform(kb, (1, fan_out), jnp.float32, -bound, bound)
        params.append((w, b))
    return params


def ref_forward(u, i, w1, b1, w2, b2):
    """bf16-aware pure-JAX reference: operands rounded to bf16 (MXU products of
    bf16 values are exact in f32), accumulation in f32 at HIGHEST precision."""
    x = jnp.concatenate([u, i], axis=1)
    xb = x.astype(jnp.bfloat16).astype(jnp.float32)
    w1b = w1.astype(jnp.bfloat16).astype(jnp.float32)
    h = jnp.maximum(
        jnp.dot(xb, w1b, precision=jax.lax.Precision.HIGHEST) + b1, 0.0)
    return jnp.dot(h, w2, precision=jax.lax.Precision.HIGHEST) + b2


if __name__ == "__main__":
    key = jax.random.PRNGKey(0)
    B, Cu, Ci, H = 8, 16, 16, 128                 # input_channels = Cu + Ci = 32

    k_u, k_i, k_p = jax.random.split(key, 3)
    user_feature = jax.random.normal(k_u, (B, Cu), jnp.float32)
    item_feature = jax.random.normal(k_i, (B, Ci), jnp.float32)
    (w1, b1), (w2, b2) = init_params(k_p, Cu + Ci, latent_dim=(H, 1))

    # Small single-tile run.
    out = mlp_forward(user_feature, item_feature, w1, b1, w2, b2)
    out = jax.block_until_ready(out)
    ref = ref_forward(user_feature, item_feature, w1, b1, w2, b2)
    assert out.shape == (B, 1)
    assert jnp.allclose(out, ref, atol=1e-3, rtol=1e-3)

    # Exercise the multi-tile (gridded, pipelined) path: 2 batch tiles of 128.
    B2 = 256
    k_u2, k_i2 = jax.random.split(jax.random.PRNGKey(1))
    u2 = jax.random.normal(k_u2, (B2, Cu), jnp.float32)
    i2 = jax.random.normal(k_i2, (B2, Ci), jnp.float32)
    out2 = jax.block_until_ready(
        mlp_forward(u2, i2, w1, b1, w2, b2, block_b=128))
    ref2 = ref_forward(u2, i2, w1, b1, w2, b2)
    assert out2.shape == (B2, 1)
    assert jnp.allclose(out2, ref2, atol=1e-3, rtol=1e-3)

    print("KERNEL_OK")
</pallas_src>

<mosaic_0001>
module attributes {stable_mosaic.version = 11 : i64} {
  func.func @mlp_kernel(%arg0: i32, %arg1: memref<8x16xbf16, #tpu.memory_space<vmem>>, %arg2: memref<8x16xbf16, #tpu.memory_space<vmem>>, %arg3: memref<16x128xbf16, #tpu.memory_space<vmem>>, %arg4: memref<16x128xbf16, #tpu.memory_space<vmem>>, %arg5: memref<1x128xf32, #tpu.memory_space<vmem>>, %arg6: memref<1x128xf32, #tpu.memory_space<vmem>>, %arg7: memref<1xf32, #tpu.memory_space<smem>>, %arg8: memref<8x1xf32, #tpu.memory_space<vmem>>) attributes {dimension_semantics = [#tpu.dimension_semantics<parallel>], iteration_bounds = array<i64: 1>, scalar_prefetch = 0 : i64, scratch_operands = 0 : i64, tpu.core_type = #tpu.core_type<tc>, window_params = [{transform_indices = @transform_0, window_bounds = array<i64: 8, 16>}, {transform_indices = @transform_1, window_bounds = array<i64: 8, 16>}, {pipeline_mode = #tpu.pipeline_mode<synchronous>, transform_indices = @transform_2, window_bounds = array<i64: 16, 128>}, {pipeline_mode = #tpu.pipeline_mode<synchronous>, transform_indices = @transform_3, window_bounds = array<i64: 16, 128>}, {pipeline_mode = #tpu.pipeline_mode<synchronous>, transform_indices = @transform_4, window_bounds = array<i64: 1, 128>}, {pipeline_mode = #tpu.pipeline_mode<synchronous>, transform_indices = @transform_5, window_bounds = array<i64: 1, 128>}, {transform_indices = @transform_6, window_bounds = array<i64: 1>}, {transform_indices = @transform_7, window_bounds = array<i64: 8, 1>}]} {
    %c0 = arith.constant 0 : index
    %c0_0 = arith.constant 0 : index
    %0 = vector.load %arg1[%c0, %c0_0] : memref<8x16xbf16, #tpu.memory_space<vmem>>, vector<8x16xbf16>
    %c0_1 = arith.constant 0 : index
    %c0_2 = arith.constant 0 : index
    %1 = vector.load %arg3[%c0_1, %c0_2] : memref<16x128xbf16, #tpu.memory_space<vmem>>, vector<16x128xbf16>
    %cst = arith.constant dense<0.000000e+00> : vector<8x128xf32>
    %2 = tpu.matmul %0, %1, %cst {dimension_numbers = #tpu.dot_dimension_numbers<[1], [0], [0], [1], [0, 0, 1, 1], [], []>} : vector<8x16xbf16>, vector<16x128xbf16>, vector<8x128xf32> -> vector<8x128xf32>
    %c0_3 = arith.constant 0 : index
    %c0_4 = arith.constant 0 : index
    %3 = vector.load %arg2[%c0_3, %c0_4] : memref<8x16xbf16, #tpu.memory_space<vmem>>, vector<8x16xbf16>
    %c0_5 = arith.constant 0 : index
    %c0_6 = arith.constant 0 : index
    %4 = vector.load %arg4[%c0_5, %c0_6] : memref<16x128xbf16, #tpu.memory_space<vmem>>, vector<16x128xbf16>
    %cst_7 = arith.constant dense<0.000000e+00> : vector<8x128xf32>
    %5 = tpu.matmul %3, %4, %cst_7 {dimension_numbers = #tpu.dot_dimension_numbers<[1], [0], [0], [1], [0, 0, 1, 1], [], []>} : vector<8x16xbf16>, vector<16x128xbf16>, vector<8x128xf32> -> vector<8x128xf32>
    %6 = arith.addf %2, %5 : vector<8x128xf32>
    %c0_8 = arith.constant 0 : index
    %c0_9 = arith.constant 0 : index
    %7 = vector.load %arg5[%c0_8, %c0_9] : memref<1x128xf32, #tpu.memory_space<vmem>>, vector<1x128xf32>
    %8 = vector.broadcast %7 : vector<1x128xf32> to vector<8x128xf32>
    %9 = arith.addf %6, %8 : vector<8x128xf32>
    %cst_10 = arith.constant 0.000000e+00 : f32
    %10 = vector.broadcast %cst_10 : f32 to vector<8x128xf32>
    %11 = arith.maximumf %9, %10 : vector<8x128xf32>
    %c0_11 = arith.constant 0 : index
    %c0_12 = arith.constant 0 : index
    %12 = vector.load %arg6[%c0_11, %c0_12] : memref<1x128xf32, #tpu.memory_space<vmem>>, vector<1x128xf32>
    %13 = vector.broadcast %12 : vector<1x128xf32> to vector<8x128xf32>
    %14 = arith.mulf %11, %13 : vector<8x128xf32>
    %cst_13 = arith.constant dense<0.000000e+00> : vector<8xf32>
    %15 = vector.multi_reduction <add>, %14, %cst_13 [1] : vector<8x128xf32> to vector<8xf32>
    %16 = vector.shape_cast %15 : vector<8xf32> to vector<8x1xf32>
    %c0_14 = arith.constant 0 : index
    %17 = memref.load %arg7[%c0_14] : memref<1xf32, #tpu.memory_space<smem>>
    %18 = vector.broadcast %17 : f32 to vector<8x1xf32>
    %19 = arith.addf %16, %18 : vector<8x1xf32>
    %c0_15 = arith.constant 0 : index
    %c0_16 = arith.constant 0 : index
    %20 = vector.load %arg8[%c0_15, %c0_16] : memref<8x1xf32, #tpu.memory_space<vmem>>, vector<8x1xf32>
    tpu.vector_store %arg8[%c0_15, %c0_16], %19 {strides = array<i32>} : memref<8x1xf32, #tpu.memory_space<vmem>>, vector<8x1xf32>,
    return
  }
  func.func @transform_0(%arg0: i32) -> (i32, i32) {
    %c0_i32 = arith.constant 0 : i32
    %c0_i32_0 = arith.constant 0 : i32
    return %arg0, %c0_i32 : i32, i32
  }
  func.func @transform_1(%arg0: i32) -> (i32, i32) {
    %c0_i32 = arith.constant 0 : i32
    %c0_i32_0 = arith.constant 0 : i32
    return %arg0, %c0_i32 : i32, i32
  }
  func.func @transform_2(%arg0: i32) -> (i32, i32) {
    %c0_i32 = arith.constant 0 : i32
    %c0_i32_0 = arith.constant 0 : i32
    %c0_i32_1 = arith.constant 0 : i32
    return %c0_i32, %c0_i32_0 : i32, i32
  }
  func.func @transform_3(%arg0: i32) -> (i32, i32) {
    %c0_i32 = arith.constant 0 : i32
    %c0_i32_0 = arith.constant 0 : i32
    %c0_i32_1 = arith.constant 0 : i32
    return %c0_i32, %c0_i32_0 : i32, i32
  }
  func.func @transform_4(%arg0: i32) -> (i32, i32) {
    %c0_i32 = arith.constant 0 : i32
    %c0_i32_0 = arith.constant 0 : i32
    %c0_i32_1 = arith.constant 0 : i32
    return %c0_i32, %c0_i32_0 : i32, i32
  }
  func.func @transform_5(%arg0: i32) -> (i32, i32) {
    %c0_i32 = arith.constant 0 : i32
    %c0_i32_0 = arith.constant 0 : i32
    %c0_i32_1 = arith.constant 0 : i32
    return %c0_i32, %c0_i32_0 : i32, i32
  }
  func.func @transform_6(%arg0: i32) -> i32 {
    %c0_i32 = arith.constant 0 : i32
    %c0_i32_0 = arith.constant 0 : i32
    return %c0_i32 : i32
  }
  func.func @transform_7(%arg0: i32) -> (i32, i32) {
    %c0_i32 = arith.constant 0 : i32
    %c0_i32_0 = arith.constant 0 : i32
    return %arg0, %c0_i32 : i32, i32
  }
}

</mosaic_0001>

<llo_original>
// kernel: tpu_custom_call.1
$region0: #{tpu_custom_call.1}
  #allocation0 [shape = 'u32[]', space=smem, size = 0x4, offset = 0x4, fixed_abs, tag = 'smem constant byte address 0x4 - core index']
  #allocation1 [shape = 'u32[144,128]{1,0:T(1,128)}', space=vmem, size = 0x12000, scoped, tag = 'internal scratch']
  #allocation2 [shape = 'f32[1]{0:T(128)S(6)}', space=smem, size = 0x200, scoped, tag = 'scoped memory for tpu_custom_call.1']
  %s0 = inlined_call_operand.hbm [shape: bf16[8,16], index: 0, kind: input, shape index: {}]
  %s1 = inlined_call_operand.hbm [shape: bf16[8,16], index: 1, kind: input, shape index: {}]
  %s2 = inlined_call_operand.hbm [shape: bf16[16,128], index: 2, kind: input, shape index: {}]
  %s3 = inlined_call_operand.hbm [shape: bf16[16,128], index: 3, kind: input, shape index: {}]
  %s4 = inlined_call_operand.vmem [shape: f32[1,128], index: 4, kind: input, shape index: {}]
  %s5 = inlined_call_operand.vmem [shape: f32[1,128], index: 5, kind: input, shape index: {}]
  %s6 = inlined_call_operand.<no memory space> [shape: f32[1], index: 6, kind: input, shape index: {}]
  %s7 = inlined_call_operand.vmem [shape: f32[8,1], index: 7, kind: output, shape index: {}]
  %s8 = sld [smem:[#allocation0]]
  $region54: #{tpu_custom_call.1} parent=0
    _
  %s10 = ssub.s32 1, %s8
  %s11 = scalar_select 0, %s10, %s8
  %12 = sst [smem:[#allocation2]] %s6
  $region1: #{tpu_custom_call.1} parent=0
    #allocation3 [shape = 'u8[2048]{0}', space=vmem, size = 0x800, scoped, tag = 'input window, operand 0, single buffered']
    #allocation4 [shape = 's32[1]{0}', space=sflag, size = 0x4, scoped, tag = 'scoped memory for tpu_custom_call.1']
    #allocation5 [shape = 'u8[2048]{0}', space=vmem, size = 0x800, scoped, tag = 'input window, operand 1, single buffered']
    #allocation6 [shape = 's32[1]{0}', space=sflag, size = 0x4, scoped, tag = 'scoped memory for tpu_custom_call.1']
    #allocation7 [shape = 'u8[4096]{0}', space=vmem, size = 0x1000, scoped, tag = 'input window, operand 2, single buffered']
    #allocation8 [shape = 'u8[4096]{0}', space=vmem, size = 0x1000, scoped, tag = 'input window, operand 3, single buffered']
    #allocation9 [shape = 's32[1]{0}', space=sflag, size = 0x4, scoped, tag = 'scoped memory for tpu_custom_call.1']
    %13 = vsyncpa [#allocation4], 0
    %14 = vsyncpa [#allocation6], 0
    %15 = vsyncpa [#allocation9], 0
    // Predicated region
    $region2: #{tpu_custom_call.1} parent=1 // pred_check
      _
    $region3: #{tpu_custom_call.1} parent=1 // pred_check_branch
      %17 = sbr.rel (0) target = $region5
    $region4: #{tpu_custom_call.1} parent=1 // pred_region
      %s19 = ssub.s32 64, 64
      %20 = vsyncadd [#allocation4], %s19
      %s22 = sshll.u32 [#allocation3], 4
      %s23 = int_to_ptr.vmem [resolvable:$true] %s22
      %25 = dma.hbm_to_vmem [thread:$0]  %s0, 64, %s23, [#allocation4]
    $region5: #{tpu_custom_call.1} parent=1 // pred_fallthru
      _
    // Predicated region
    $region6: #{tpu_custom_call.1} parent=1 // pred_check
      _
    $region7: #{tpu_custom_call.1} parent=1 // pred_check_branch
      %27 = sbr.rel (0) target = $region9
    $region8: #{tpu_custom_call.1} parent=1 // pred_region
      %s29 = ssub.s32 64, 64
      %30 = vsyncadd [#allocation6], %s29
      %s32 = sshll.u32 [#allocation5], 4
      %s33 = int_to_ptr.vmem [resolvable:$true] %s32
      %35 = dma.hbm_to_vmem [thread:$0]  %s1, 64, %s33, [#allocation6]
    $region9: #{tpu_custom_call.1} parent=1 // pred_fallthru
      _
    // Predicated region
    $region10: #{tpu_custom_call.1} parent=1 // pred_check
      _
    $region11: #{tpu_custom_call.1} parent=1 // pred_check_branch
      %37 = sbr.rel (0) target = $region13
    $region12: #{tpu_custom_call.1} parent=1 // pred_region
      %s39 = ssub.s32 128, 128
      %40 = vsyncadd [#allocation6], %s39
      %s41 = sshll.u32 [#allocation7], 4
      %s42 = int_to_ptr.vmem [resolvable:$true] %s41
      %47 = dma.hbm_to_vmem [thread:$0]  %s2, 128, %s42, [#allocation6], 64, 64, 4
    $region13: #{tpu_custom_call.1} parent=1 // pred_fallthru
      _
    // Predicated region
    $region14: #{tpu_custom_call.1} parent=1 // pred_check
      _
    $region15: #{tpu_custom_call.1} parent=1 // pred_check_branch
      %49 = sbr.rel (0) target = $region17
    $region16: #{tpu_custom_call.1} parent=1 // pred_region
      %s51 = ssub.s32 128, 128
      %52 = vsyncadd [#allocation9], %s51
      %s53 = sshll.u32 [#allocation8], 4
      %s54 = int_to_ptr.vmem [resolvable:$true] %s53
      %59 = dma.hbm_to_vmem [thread:$0]  %s3, 128, %s54, [#allocation9], 64, 64, 4
    $region17: #{tpu_custom_call.1} parent=1 // pred_fallthru
      _
    // Predicated region
    $region18: #{tpu_custom_call.1} parent=1 // pred_check
      _
    $region19: #{tpu_custom_call.1} parent=1 // pred_check_branch
      %61 = sbr.rel (0) target = $region21
    $region20: #{tpu_custom_call.1} parent=1 // pred_region
      _
    $region21: #{tpu_custom_call.1} parent=1 // pred_fallthru
      _
    // Predicated region
    $region22: #{tpu_custom_call.1} parent=1 // pred_check
      _
    $region23: #{tpu_custom_call.1} parent=1 // pred_check_branch
      %63 = sbr.rel (0) target = $region25
    $region24: #{tpu_custom_call.1} parent=1 // pred_region
      _
    $region25: #{tpu_custom_call.1} parent=1 // pred_fallthru
      _
    // Predicated region
    $region26: #{tpu_custom_call.1} parent=1 // pred_check
      _
    $region27: #{tpu_custom_call.1} parent=1 // pred_check_branch
      %65 = sbr.rel (0) target = $region29
    $region28: #{tpu_custom_call.1} parent=1 // pred_region
      _
    $region29: #{tpu_custom_call.1} parent=1 // pred_fallthru
      _
    // Predicated region
    $region30: #{tpu_custom_call.1} parent=1 // pred_check
      _
    $region31: #{tpu_custom_call.1} parent=1 // pred_check_branch
      %67 = sbr.rel (0) target = $region33
    $region32: #{tpu_custom_call.1} parent=1 // pred_region
      %68 = dma.done [#allocation4], 64
    $region33: #{tpu_custom_call.1} parent=1 // pred_fallthru
      _
    // Predicated region
    $region34: #{tpu_custom_call.1} parent=1 // pred_check
      _
    $region35: #{tpu_custom_call.1} parent=1 // pred_check_branch
      %70 = sbr.rel (0) target = $region37
    $region36: #{tpu_custom_call.1} parent=1 // pred_region
      %71 = dma.done [#allocation6], 64
    $region37: #{tpu_custom_call.1} parent=1 // pred_fallthru
      _
    // Predicated region
    $region38: #{tpu_custom_call.1} parent=1 // pred_check
      _
    $region39: #{tpu_custom_call.1} parent=1 // pred_check_branch
      %73 = sbr.rel (0) target = $region41
    $region40: #{tpu_custom_call.1} parent=1 // pred_region
      %74 = dma.done [#allocation6], 128
    $region41: #{tpu_custom_call.1} parent=1 // pred_fallthru
      _
    // Predicated region
    $region42: #{tpu_custom_call.1} parent=1 // pred_check
      _
    $region43: #{tpu_custom_call.1} parent=1 // pred_check_branch
      %76 = sbr.rel (0) target = $region45
    $region44: #{tpu_custom_call.1} parent=1 // pred_region
      %77 = dma.done [#allocation9], 128
    $region45: #{tpu_custom_call.1} parent=1 // pred_fallthru
      _
    %v79 = vld [vmem:[#allocation3] sm:$0xf]
    %v80 = vld [vmem:[#allocation7] sm:$0xf]
    %v81 = vld [vmem:[#allocation7 + $0x4] sm:$0xf]
    %v82 = vld [vmem:[#allocation5] sm:$0xf]
    %v83 = vld [vmem:[#allocation8] sm:$0xf]
    %v84 = vld [vmem:[#allocation8 + $0x4] sm:$0xf]
    %v87 = vunpack.c.l.b16 %v83
    %v88 = vunpack.c.l.b16 %v84
    %v89 = vpack.c.b16 %v88, %v87
    %vm91 = vcmask 130048
    %v93 = vsel %vm91, %v82, 0
    %95 = vmatprep.subr.bf16.mxu0 0
    %96 = vmatpush1.bf16.msra.mxu0 0
    %97 = vmatprep.subr.bf16.mxu0 0
    %98 = vmatpush1.bf16.msra.mxu0 0
    %99 = vmatprep.subr.bf16.mxu0 0
    %100 = vmatpush1.bf16.msra.mxu0 0
    %101 = vmatprep.subr.bf16.mxu0 0
    %102 = vmatpush1.bf16.msra.mxu0 0
    %103 = vmatprep.subr.bf16.mxu0 0
    %104 = vmatpush1.bf16.msra.mxu0 0
    %105 = vmatprep.subr.bf16.mxu0 0
    %106 = vmatpush1.bf16.msra.mxu0 0
    %107 = vmatprep.subr.bf16.mxu0 0
    %108 = vmatpush1.bf16.msra.mxu0 0
    %109 = vmatprep.subr.bf16.mxu0 0
    %110 = vmatpush1.bf16.msra.mxu0 %v89
    %111 = vmatprep.subr.bf16.mxu0 0
    %112 = vmatpush2.bf16.msra.mxu0 0
    %113 = vmatprep.subr.bf16.mxu0 0
    %114 = vmatpush2.bf16.msra.mxu0 0
    %115 = vmatprep.subr.bf16.mxu0 0
    %116 = vmatpush2.bf16.msra.mxu0 0
    %117 = vmatprep.subr.bf16.mxu0 0
    %118 = vmatpush2.bf16.msra.mxu0 0
    %119 = vmatprep.subr.bf16.mxu0 0
    %120 = vmatpush2.bf16.msra.mxu0 0
    %121 = vmatprep.subr.bf16.mxu0 0
    %122 = vmatpush2.bf16.msra.mxu0 0
    %123 = vmatprep.subr.bf16.mxu0 0
    %124 = vmatpush2.bf16.msra.mxu0 0
    %125 = vmatprep.subr.bf16.mxu0 0
    %126 = vmatpush2.bf16.msra.mxu0 0
    %127 = vmatprep.mubr.bf16.mxu0 0
    %128 = vmatmul.mubr.bf16.gmra.mxu0 %v93
    %v129 = vpop.f32.mrf.mxu0
    %v130 = vadd.f32 0.0, %v129
    %v131 = vpop.f32.mrf.mxu0
    %v132 = vpop.f32.mrf.mxu0
    %v133 = vpop.f32.mrf.mxu0
    %134 = vdwg.mxu0
    %v137 = vunpack.c.l.b16 %v80
    %v138 = vunpack.c.l.b16 %v81
    %v139 = vpack.c.b16 %v138, %v137
    %v142 = vsel %vm91, %v79, 0
    %144 = vmatprep.subr.bf16.mxu0 0
    %145 = vmatpush1.bf16.msra.mxu0 0
    %146 = vmatprep.subr.bf16.mxu0 0
    %147 = vmatpush1.bf16.msra.mxu0 0
    %148 = vmatprep.subr.bf16.mxu0 0
    %149 = vmatpush1.bf16.msra.mxu0 0
    %150 = vmatprep.subr.bf16.mxu0 0
    %151 = vmatpush1.bf16.msra.mxu0 0
    %152 = vmatprep.subr.bf16.mxu0 0
    %153 = vmatpush1.bf16.msra.mxu0 0
    %154 = vmatprep.subr.bf16.mxu0 0
    %155 = vmatpush1.bf16.msra.mxu0 0
    %156 = vmatprep.subr.bf16.mxu0 0
    %157 = vmatpush1.bf16.msra.mxu0 0
    %158 = vmatprep.subr.bf16.mxu0 0
    %159 = vmatpush1.bf16.msra.mxu0 %v139
    %160 = vmatprep.subr.bf16.mxu0 0
    %161 = vmatpush2.bf16.msra.mxu0 0
    %162 = vmatprep.subr.bf16.mxu0 0
    %163 = vmatpush2.bf16.msra.mxu0 0
    %164 = vmatprep.subr.bf16.mxu0 0
    %165 = vmatpush2.bf16.msra.mxu0 0
    %166 = vmatprep.subr.bf16.mxu0 0
    %167 = vmatpush2.bf16.msra.mxu0 0
    %168 = vmatprep.subr.bf16.mxu0 0
    %169 = vmatpush2.bf16.msra.mxu0 0
    %170 = vmatprep.subr.bf16.mxu0 0
    %171 = vmatpush2.bf16.msra.mxu0 0
    %172 = vmatprep.subr.bf16.mxu0 0
    %173 = vmatpush2.bf16.msra.mxu0 0
    %174 = vmatprep.subr.bf16.mxu0 0
    %175 = vmatpush2.bf16.msra.mxu0 0
    %176 = vmatprep.mubr.bf16.mxu0 0
    %177 = vmatmul.mubr.bf16.gmra.mxu0 %v142
    %v178 = vpop.f32.mrf.mxu0
    %v179 = vadd.f32 %v130, %v178
    %v180 = vpop.f32.mrf.mxu0
    %v181 = vpop.f32.mrf.mxu0
    %v182 = vpop.f32.mrf.mxu0
    %183 = vdwg.mxu0
    %v184 = vld [vmem:[%s4] sm:$0x1]
    %v186 = vlaneseq
    %v187 = vshrl.u32 %v186, 7
    %v188 = vsub.s32 0, %v187
    %v189 = vrot.slane %v184, %v188
    %v191 = vadd.f32 %v179, %v189
    %v192 = vmax.f32 %v191, 0.0
    %v193 = vld [vmem:[%s5] sm:$0x1]
    %v195 = vlaneseq
    %v196 = vshrl.u32 %v195, 7
    %v197 = vsub.s32 0, %v196
    %v198 = vrot.slane %v193, %v197
    %v200 = vmul.f32 %v192, %v198
    %201 = vadd.xlane.f32.xlu0 %v200
    %v202 = vpop.xlane.xlu0 %201
    %s203 = sld [smem:[#allocation2]]
    %v204 = vstv %s203
    %v205 = vadd.f32 %v202, %v204
    %vm206 = vcmask 7168
    %207 = vst.msk [vmem:[%s7] sm:$0xff] %vm206, %v205
    // Predicated region
    $region46: #{tpu_custom_call.1} parent=1 // pred_check
      _
    $region47: #{tpu_custom_call.1} parent=1 // pred_check_branch
      %209 = sbr.rel (0) target = $region49
    $region48: #{tpu_custom_call.1} parent=1 // pred_region
      _
    $region49: #{tpu_custom_call.1} parent=1 // pred_fallthru
      _
    // Predicated region
    $region50: #{tpu_custom_call.1} parent=1 // pred_check
      _
    $region51: #{tpu_custom_call.1} parent=1 // pred_check_branch
      %211 = sbr.rel (0) target = $region53
    $region52: #{tpu_custom_call.1} parent=1 // pred_region
      _
    $region53: #{tpu_custom_call.1} parent=1 // pred_fallthru
      _
    %212 = vsyncpa [#allocation4], 1
    %213 = vsyncpa [#allocation6], 1
    %214 = vsyncpa [#allocation9], 1

</llo_original>
